<compile_context>
chip_gen: v6e
topology: v6e:2x2x1
jax: 0.10.0
libtpu: 0.0.40
codegen_flags: <defaults>
</compile_context>

<pallas_src>
import jax
import jax.numpy as jnp
from jax import lax
from jax.experimental import pallas as pl
from jax.experimental.pallas import tpu as pltpu

# ----- config (Cfg) -----
SUB_BLOCKS = 2          # cfg.sub_blocks
KERNELS = 2             # cfg.kernels
R = 16                  # cfg.residual_channels
G = 32                  # cfg.gate_channels
S = 16                  # cfg.skip_channels
B = 2                   # batch
T = 16                  # sequence length (even, so dilated output is T // 2)
HALF = T // 2
BT = B * T

# packed-weight row offsets (all multiples of 8 at this config)
OFF_BIG = 0                                 # (SB*K*R, 2G)  signal|gate taps
OFF_OUT = OFF_BIG + SUB_BLOCKS * KERNELS * R  # (SB*G, R)   output 1x1 conv
OFF_DIL = OFF_OUT + SUB_BLOCKS * G            # (2R, R)     dilated conv taps
OFF_SKIP = OFF_DIL + 2 * R                    # (R, S)      skip 1x1 conv
W_ROWS = OFF_SKIP + R
W_LANES = 2 * G

# packed-bias row offsets
B_BIG = 0                      # SUB_BLOCKS rows, width 2G
B_OUT = SUB_BLOCKS             # SUB_BLOCKS rows, width R
B_DIL = 2 * SUB_BLOCKS         # 1 row, width R
B_SKIP = B_DIL + 1             # 1 row, width S
B_ROWS = B_SKIP + 1


def _blocks_kernel(x_ref, w_ref, b_ref, dil_ref, skip_ref):
    x = x_ref[...]                                    # (B*T, R), batch on sublanes

    # hoisted causal masks: in-segment position, built once and reused
    pos = lax.broadcasted_iota(jnp.int32, (BT, R), 0) % T
    masks = {s: pos < s for s in range(1, max(KERNELS, 2))}

    def shifted(v, s):
        # v[j] -> v[j - s] within each T-row batch segment, zero fill
        if s == 0:
            return v
        return jnp.where(masks[s], 0.0, pltpu.roll(v, s, axis=0))

    # --- sequential gated sub-blocks (split-weight matmuls, no lane concat) ---
    for i in range(SUB_BLOCKS):
        sg = b_ref[B_BIG + i:B_BIG + i + 1, :]        # (1, 2G) bias, broadcasts
        for k in range(KERNELS):
            r0 = OFF_BIG + (i * KERNELS + k) * R
            sg = sg + jnp.dot(shifted(x, KERNELS - 1 - k),
                              w_ref[r0:r0 + R, :],
                              preferred_element_type=jnp.float32)
        sig = jnp.maximum(sg[:, :G], 0.0)             # relu branch
        gate = jax.nn.sigmoid(sg[:, G:])              # gate branch
        o0 = OFF_OUT + i * G
        gated = jnp.dot(sig * gate, w_ref[o0:o0 + G, :R],
                        preferred_element_type=jnp.float32)
        x = x + gated + b_ref[B_OUT + i:B_OUT + i + 1, :R]   # residual

    # --- dilated conv at full rate: y[j] = W0 @ x[j-1] + W1 @ x[j] + b ---
    # (left-pad 1, kernel 2, stride 2  =>  out[t] = y[2t]; wrapper picks even rows)
    x_prev = shifted(x, 1)
    dil_ref[...] = (
        jnp.dot(x_prev, w_ref[OFF_DIL:OFF_DIL + R, :R],
                preferred_element_type=jnp.float32)
        + jnp.dot(x, w_ref[OFF_DIL + R:OFF_DIL + 2 * R, :R],
                  preferred_element_type=jnp.float32)
        + b_ref[B_DIL:B_DIL + 1, :R])

    # --- skip at full rate (wrapper keeps the last time step of each batch) ---
    skip_ref[...] = (jnp.dot(x, w_ref[OFF_SKIP:OFF_SKIP + R, :S],
                             preferred_element_type=jnp.float32)
                     + b_ref[B_SKIP:B_SKIP + 1, :S])


def pack_params(params):
    """One-time host-side packing of all weights/biases into two buffers."""
    (sig_w, sig_b, gate_w, gate_b, out_w, out_b,
     dil_w, dil_b, skip_w, skip_b) = params

    w = jnp.zeros((W_ROWS, W_LANES), jnp.float32)
    b = jnp.zeros((B_ROWS, W_LANES), jnp.float32)

    # signal/gate convs -> matmul form x(.,R) @ W(R, 2G), per sub-block per tap
    wsig = jnp.transpose(sig_w, (0, 3, 2, 1)).reshape(SUB_BLOCKS * KERNELS * R, G)
    wgate = jnp.transpose(gate_w, (0, 3, 2, 1)).reshape(SUB_BLOCKS * KERNELS * R, G)
    w = w.at[OFF_BIG:OFF_BIG + SUB_BLOCKS * KERNELS * R, :].set(
        jnp.concatenate([wsig, wgate], axis=-1))
    # output 1x1 conv: (SB, R, G, 1) -> (SB*G, R)
    wout = jnp.transpose(out_w[..., 0], (0, 2, 1)).reshape(SUB_BLOCKS * G, R)
    w = w.at[OFF_OUT:OFF_OUT + SUB_BLOCKS * G, :R].set(wout)
    # dilated conv (R, R, 2): tap0 rows then tap1 rows, each (R_in, R_out)
    wdil = jnp.transpose(dil_w, (2, 1, 0)).reshape(2 * R, R)
    w = w.at[OFF_DIL:OFF_DIL + 2 * R, :R].set(wdil)
    # skip 1x1 conv (S, R, 1) -> (R, S)
    w = w.at[OFF_SKIP:OFF_SKIP + R, :S].set(jnp.transpose(skip_w[..., 0], (1, 0)))

    b = b.at[B_BIG:B_BIG + SUB_BLOCKS, :].set(
        jnp.concatenate([sig_b, gate_b], axis=-1))
    b = b.at[B_OUT:B_OUT + SUB_BLOCKS, :R].set(out_b)
    b = b.at[B_DIL, :R].set(dil_b)
    b = b.at[B_SKIP, :S].set(skip_b)
    return w, b


@jax.jit
def blocks_forward(x_ncw, w_packed, b_packed):
    """x_ncw: (B, R, T) float32 (PyTorch NCW). Returns (dilated, skip) in NCW."""
    # fold batch onto sublanes: (B, R, T) -> (B*T, R)
    x_flat = jnp.transpose(x_ncw, (0, 2, 1)).reshape(BT, R)

    def full(shape):
        zeros = (0,) * len(shape)
        return pl.BlockSpec(shape, lambda *_: zeros)

    dil_full, skip_full = pl.pallas_call(
        _blocks_kernel,
        out_shape=(jax.ShapeDtypeStruct((BT, R), jnp.float32),
                   jax.ShapeDtypeStruct((BT, S), jnp.float32)),
        grid=(1,),
        in_specs=[full((BT, R)), full((W_ROWS, W_LANES)), full((B_ROWS, W_LANES))],
        out_specs=(full((BT, R)), full((BT, S))),
    )(x_flat, w_packed, b_packed)

    # natural-layout unpack in the wrapper (cheap strided slices)
    dilated = dil_full.reshape(B, T, R)[:, ::2, :].transpose(0, 2, 1)  # (B, R, T//2)
    skip = skip_full.reshape(B, T, S)[:, T - 1, :].reshape(B, S, 1)    # (B, S, 1)
    return dilated, skip


# ----- pure-JAX reference (mirrors the PyTorch module exactly) -----
def _conv1d(x, w, b, stride=1, pad_left=0):
    if pad_left:
        x = jnp.pad(x, ((0, 0), (0, 0), (pad_left, 0)))
    y = lax.conv_general_dilated(x, w, window_strides=(stride,), padding="VALID",
                                 dimension_numbers=("NCH", "OIH", "NCH"))
    return y + b[None, :, None]


def ref_forward(x, params):
    (sig_w, sig_b, gate_w, gate_b, out_w, out_b,
     dil_w, dil_b, skip_w, skip_b) = params
    g = x
    for i in range(SUB_BLOCKS):
        padded = jnp.pad(g, ((0, 0), (0, 0), (KERNELS - 1, 0)))
        sig = jax.nn.relu(_conv1d(padded, sig_w[i], sig_b[i]))
        gate = jax.nn.sigmoid(_conv1d(padded, gate_w[i], gate_b[i]))
        g = g + _conv1d(sig * gate, out_w[i], out_b[i])
    dil = _conv1d(g, dil_w, dil_b, stride=2, pad_left=1)
    skip = _conv1d(g[:, :, -1:], skip_w, skip_b)
    return dil, skip


if __name__ == "__main__":
    key = jax.random.PRNGKey(0)
    ks = jax.random.split(key, 11)
    sc = 0.1
    # PyTorch Conv1d weight layout: (out_channels, in_channels, kernel)
    sig_w = sc * jax.random.normal(ks[0], (SUB_BLOCKS, G, R, KERNELS), jnp.float32)
    sig_b = sc * jax.random.normal(ks[1], (SUB_BLOCKS, G), jnp.float32)
    gate_w = sc * jax.random.normal(ks[2], (SUB_BLOCKS, G, R, KERNELS), jnp.float32)
    gate_b = sc * jax.random.normal(ks[3], (SUB_BLOCKS, G), jnp.float32)
    out_w = sc * jax.random.normal(ks[4], (SUB_BLOCKS, R, G, 1), jnp.float32)
    out_b = sc * jax.random.normal(ks[5], (SUB_BLOCKS, R), jnp.float32)
    dil_w = sc * jax.random.normal(ks[6], (R, R, 2), jnp.float32)
    dil_b = sc * jax.random.normal(ks[7], (R,), jnp.float32)
    skip_w = sc * jax.random.normal(ks[8], (S, R, 1), jnp.float32)
    skip_b = sc * jax.random.normal(ks[9], (S,), jnp.float32)
    params = (sig_w, sig_b, gate_w, gate_b, out_w, out_b,
              dil_w, dil_b, skip_w, skip_b)

    x = jax.random.normal(ks[10], (B, R, T), jnp.float32)   # NCW, like PyTorch

    # one-time weight packing (kept outside the per-call path)
    w_packed, b_packed = pack_params(params)
    w_packed = jax.block_until_ready(w_packed)
    b_packed = jax.block_until_ready(b_packed)

    dil_out, skip_out = blocks_forward(x, w_packed, b_packed)
    dil_out = jax.block_until_ready(dil_out)
    skip_out = jax.block_until_ready(skip_out)

    dil_ref, skip_ref = ref_forward(x, params)
    assert dil_out.shape == (B, R, T // 2) and skip_out.shape == (B, S, 1)
    assert jnp.allclose(dil_out, dil_ref, atol=1e-4, rtol=1e-4)
    assert jnp.allclose(skip_out, skip_ref, atol=1e-4, rtol=1e-4)
    print("KERNEL_OK")
</pallas_src>

<mosaic_0001>
module attributes {stable_mosaic.version = 11 : i64} {
  func.func @_blocks_kernel(%arg0: i32, %arg1: memref<32x16xf32, #tpu.memory_space<vmem>>, %arg2: memref<176x64xf32, #tpu.memory_space<vmem>>, %arg3: memref<6x64xf32, #tpu.memory_space<vmem>>, %arg4: memref<32x16xf32, #tpu.memory_space<vmem>>, %arg5: memref<32x16xf32, #tpu.memory_space<vmem>>) attributes {dimension_semantics = [#tpu.dimension_semantics<arbitrary>], iteration_bounds = array<i64: 1>, scalar_prefetch = 0 : i64, scratch_operands = 0 : i64, tpu.core_type = #tpu.core_type<tc>, window_params = [{pipeline_mode = #tpu.pipeline_mode<synchronous>, transform_indices = @transform_0, window_bounds = array<i64: 32, 16>}, {pipeline_mode = #tpu.pipeline_mode<synchronous>, transform_indices = @transform_1, window_bounds = array<i64: 176, 64>}, {pipeline_mode = #tpu.pipeline_mode<synchronous>, transform_indices = @transform_2, window_bounds = array<i64: 6, 64>}, {pipeline_mode = #tpu.pipeline_mode<synchronous>, transform_indices = @transform_3, window_bounds = array<i64: 32, 16>}, {pipeline_mode = #tpu.pipeline_mode<synchronous>, transform_indices = @transform_4, window_bounds = array<i64: 32, 16>}]} {
    %c0 = arith.constant 0 : index
    %c0_0 = arith.constant 0 : index
    %0 = vector.load %arg1[%c0, %c0_0] : memref<32x16xf32, #tpu.memory_space<vmem>>, vector<32x16xf32>
    %1 = tpu.iota {dimensions = array<i32: 0>} : vector<32x16xi32>
    %c16_i32 = arith.constant 16 : i32
    %c0_i32 = arith.constant 0 : i32
    %2 = arith.cmpi eq, %c16_i32, %c0_i32 : i32
    %c1_i32 = arith.constant 1 : i32
    %3 = arith.select %2, %c1_i32, %c16_i32 : i32
    %4 = vector.broadcast %3 : i32 to vector<32x16xi32>
    %5 = arith.remsi %1, %4 : vector<32x16xi32>
    %c0_i32_1 = arith.constant 0 : i32
    %6 = vector.broadcast %c0_i32_1 : i32 to vector<32x16xi32>
    %7 = arith.cmpi ne, %5, %6 : vector<32x16xi32>
    %c0_i32_2 = arith.constant 0 : i32
    %8 = vector.broadcast %c0_i32_2 : i32 to vector<32x16xi32>
    %9 = arith.cmpi slt, %5, %8 : vector<32x16xi32>
    %c0_i32_3 = arith.constant 0 : i32
    %10 = arith.cmpi slt, %3, %c0_i32_3 : i32
    %11 = vector.broadcast %10 : i1 to vector<32x16xi1>
    %12 = vector.broadcast %11 : vector<32x16xi1> to vector<32x16xi1>
    %13 = arith.xori %9, %12 : vector<32x16xi1>
    %14 = arith.andi %13, %7 : vector<32x16xi1>
    %15 = vector.broadcast %3 : i32 to vector<32x16xi32>
    %16 = arith.addi %5, %15 : vector<32x16xi32>
    %17 = arith.select %14, %16, %5 : vector<32x16xi1>, vector<32x16xi32>
    %c1_i32_4 = arith.constant 1 : i32
    %18 = vector.broadcast %c1_i32_4 : i32 to vector<32x16xi32>
    %19 = arith.cmpi slt, %17, %18 : vector<32x16xi32>
    %c0_5 = arith.constant 0 : index
    %c0_6 = arith.constant 0 : index
    %20 = vector.load %arg3[%c0_5, %c0_6] : memref<6x64xf32, #tpu.memory_space<vmem>>, vector<1x64xf32>
    %c1_i32_7 = arith.constant 1 : i32
    %21 = tpu.dynamic_rotate %0 by %c1_i32_7 dim 0 : vector<32x16xf32>, i32 -> vector<32x16xf32>
    %cst = arith.constant 0.000000e+00 : f32
    %22 = vector.broadcast %cst : f32 to vector<32x16xf32>
    %23 = arith.select %19, %22, %21 : vector<32x16xi1>, vector<32x16xf32>
    %c0_8 = arith.constant 0 : index
    %c0_9 = arith.constant 0 : index
    %24 = vector.load %arg2[%c0_8, %c0_9] : memref<176x64xf32, #tpu.memory_space<vmem>>, vector<16x64xf32>
    %cst_10 = arith.constant dense<0.000000e+00> : vector<32x64xf32>
    %25 = tpu.matmul %23, %24, %cst_10 {dimension_numbers = #tpu.dot_dimension_numbers<[1], [0], [0], [1], [0, 0, 1, 1], [], []>} : vector<32x16xf32>, vector<16x64xf32>, vector<32x64xf32> -> vector<32x64xf32>
    %26 = vector.broadcast %20 : vector<1x64xf32> to vector<32x64xf32>
    %27 = arith.addf %26, %25 : vector<32x64xf32>
    %c16 = arith.constant 16 : index
    %c0_11 = arith.constant 0 : index
    %28 = vector.load %arg2[%c16, %c0_11] : memref<176x64xf32, #tpu.memory_space<vmem>>, vector<16x64xf32>
    %cst_12 = arith.constant dense<0.000000e+00> : vector<32x64xf32>
    %29 = tpu.matmul %0, %28, %cst_12 {dimension_numbers = #tpu.dot_dimension_numbers<[1], [0], [0], [1], [0, 0, 1, 1], [], []>} : vector<32x16xf32>, vector<16x64xf32>, vector<32x64xf32> -> vector<32x64xf32>
    %30 = arith.addf %27, %29 : vector<32x64xf32>
    %31 = vector.extract_strided_slice %30 {offsets = [0, 0], sizes = [32, 32], strides = [1, 1]} : vector<32x64xf32> to vector<32x32xf32>
    %cst_13 = arith.constant 0.000000e+00 : f32
    %32 = vector.broadcast %cst_13 : f32 to vector<32x32xf32>
    %33 = arith.maximumf %31, %32 : vector<32x32xf32>
    %34 = vector.extract_strided_slice %30 {offsets = [0, 32], sizes = [32, 32], strides = [1, 1]} : vector<32x64xf32> to vector<32x32xf32>
    %35 = arith.negf %34 : vector<32x32xf32>
    %36 = math.exp %35 : vector<32x32xf32>
    %cst_14 = arith.constant 1.000000e+00 : f32
    %37 = vector.broadcast %cst_14 : f32 to vector<32x32xf32>
    %38 = arith.addf %37, %36 : vector<32x32xf32>
    %39 = arith.divf %37, %38 : vector<32x32xf32>
    %40 = arith.mulf %33, %39 : vector<32x32xf32>
    %c64 = arith.constant 64 : index
    %c0_15 = arith.constant 0 : index
    %41 = vector.load %arg2[%c64, %c0_15] : memref<176x64xf32, #tpu.memory_space<vmem>>, vector<32x16xf32>
    %cst_16 = arith.constant dense<0.000000e+00> : vector<32x16xf32>
    %42 = tpu.matmul %40, %41, %cst_16 {dimension_numbers = #tpu.dot_dimension_numbers<[1], [0], [0], [1], [0, 0, 1, 1], [], []>} : vector<32x32xf32>, vector<32x16xf32>, vector<32x16xf32> -> vector<32x16xf32>
    %43 = arith.addf %0, %42 : vector<32x16xf32>
    %c2 = arith.constant 2 : index
    %c0_17 = arith.constant 0 : index
    %44 = vector.load %arg3[%c2, %c0_17] : memref<6x64xf32, #tpu.memory_space<vmem>>, vector<1x16xf32>
    %45 = vector.broadcast %44 : vector<1x16xf32> to vector<32x16xf32>
    %46 = arith.addf %43, %45 : vector<32x16xf32>
    %c1 = arith.constant 1 : index
    %c0_18 = arith.constant 0 : index
    %47 = vector.load %arg3[%c1, %c0_18] : memref<6x64xf32, #tpu.memory_space<vmem>>, vector<1x64xf32>
    %c1_i32_19 = arith.constant 1 : i32
    %48 = tpu.dynamic_rotate %46 by %c1_i32_19 dim 0 : vector<32x16xf32>, i32 -> vector<32x16xf32>
    %cst_20 = arith.constant 0.000000e+00 : f32
    %49 = vector.broadcast %cst_20 : f32 to vector<32x16xf32>
    %50 = arith.select %19, %49, %48 : vector<32x16xi1>, vector<32x16xf32>
    %c32 = arith.constant 32 : index
    %c0_21 = arith.constant 0 : index
    %51 = vector.load %arg2[%c32, %c0_21] : memref<176x64xf32, #tpu.memory_space<vmem>>, vector<16x64xf32>
    %cst_22 = arith.constant dense<0.000000e+00> : vector<32x64xf32>
    %52 = tpu.matmul %50, %51, %cst_22 {dimension_numbers = #tpu.dot_dimension_numbers<[1], [0], [0], [1], [0, 0, 1, 1], [], []>} : vector<32x16xf32>, vector<16x64xf32>, vector<32x64xf32> -> vector<32x64xf32>
    %53 = vector.broadcast %47 : vector<1x64xf32> to vector<32x64xf32>
    %54 = arith.addf %53, %52 : vector<32x64xf32>
    %c48 = arith.constant 48 : index
    %c0_23 = arith.constant 0 : index
    %55 = vector.load %arg2[%c48, %c0_23] : memref<176x64xf32, #tpu.memory_space<vmem>>, vector<16x64xf32>
    %cst_24 = arith.constant dense<0.000000e+00> : vector<32x64xf32>
    %56 = tpu.matmul %46, %55, %cst_24 {dimension_numbers = #tpu.dot_dimension_numbers<[1], [0], [0], [1], [0, 0, 1, 1], [], []>} : vector<32x16xf32>, vector<16x64xf32>, vector<32x64xf32> -> vector<32x64xf32>
    %57 = arith.addf %54, %56 : vector<32x64xf32>
    %58 = vector.extract_strided_slice %57 {offsets = [0, 0], sizes = [32, 32], strides = [1, 1]} : vector<32x64xf32> to vector<32x32xf32>
    %cst_25 = arith.constant 0.000000e+00 : f32
    %59 = vector.broadcast %cst_25 : f32 to vector<32x32xf32>
    %60 = arith.maximumf %58, %59 : vector<32x32xf32>
    %61 = vector.extract_strided_slice %57 {offsets = [0, 32], sizes = [32, 32], strides = [1, 1]} : vector<32x64xf32> to vector<32x32xf32>
    %62 = arith.negf %61 : vector<32x32xf32>
    %63 = math.exp %62 : vector<32x32xf32>
    %cst_26 = arith.constant 1.000000e+00 : f32
    %64 = vector.broadcast %cst_26 : f32 to vector<32x32xf32>
    %65 = arith.addf %64, %63 : vector<32x32xf32>
    %66 = arith.divf %64, %65 : vector<32x32xf32>
    %67 = arith.mulf %60, %66 : vector<32x32xf32>
    %c96 = arith.constant 96 : index
    %c0_27 = arith.constant 0 : index
    %68 = vector.load %arg2[%c96, %c0_27] : memref<176x64xf32, #tpu.memory_space<vmem>>, vector<32x16xf32>
    %cst_28 = arith.constant dense<0.000000e+00> : vector<32x16xf32>
    %69 = tpu.matmul %67, %68, %cst_28 {dimension_numbers = #tpu.dot_dimension_numbers<[1], [0], [0], [1], [0, 0, 1, 1], [], []>} : vector<32x32xf32>, vector<32x16xf32>, vector<32x16xf32> -> vector<32x16xf32>
    %70 = arith.addf %46, %69 : vector<32x16xf32>
    %c3 = arith.constant 3 : index
    %c0_29 = arith.constant 0 : index
    %71 = vector.load %arg3[%c3, %c0_29] : memref<6x64xf32, #tpu.memory_space<vmem>>, vector<1x16xf32>
    %72 = vector.broadcast %71 : vector<1x16xf32> to vector<32x16xf32>
    %73 = arith.addf %70, %72 : vector<32x16xf32>
    %c1_i32_30 = arith.constant 1 : i32
    %74 = tpu.dynamic_rotate %73 by %c1_i32_30 dim 0 : vector<32x16xf32>, i32 -> vector<32x16xf32>
    %cst_31 = arith.constant 0.000000e+00 : f32
    %75 = vector.broadcast %cst_31 : f32 to vector<32x16xf32>
    %76 = arith.select %19, %75, %74 : vector<32x16xi1>, vector<32x16xf32>
    %c128 = arith.constant 128 : index
    %c0_32 = arith.constant 0 : index
    %77 = vector.load %arg2[%c128, %c0_32] : memref<176x64xf32, #tpu.memory_space<vmem>>, vector<16x16xf32>
    %cst_33 = arith.constant dense<0.000000e+00> : vector<32x16xf32>
    %78 = tpu.matmul %76, %77, %cst_33 {dimension_numbers = #tpu.dot_dimension_numbers<[1], [0], [0], [1], [0, 0, 1, 1], [], []>} : vector<32x16xf32>, vector<16x16xf32>, vector<32x16xf32> -> vector<32x16xf32>
    %c144 = arith.constant 144 : index
    %c0_34 = arith.constant 0 : index
    %79 = vector.load %arg2[%c144, %c0_34] : memref<176x64xf32, #tpu.memory_space<vmem>>, vector<16x16xf32>
    %cst_35 = arith.constant dense<0.000000e+00> : vector<32x16xf32>
    %80 = tpu.matmul %73, %79, %cst_35 {dimension_numbers = #tpu.dot_dimension_numbers<[1], [0], [0], [1], [0, 0, 1, 1], [], []>} : vector<32x16xf32>, vector<16x16xf32>, vector<32x16xf32> -> vector<32x16xf32>
    %81 = arith.addf %78, %80 : vector<32x16xf32>
    %c4 = arith.constant 4 : index
    %c0_36 = arith.constant 0 : index
    %82 = vector.load %arg3[%c4, %c0_36] : memref<6x64xf32, #tpu.memory_space<vmem>>, vector<1x16xf32>
    %83 = vector.broadcast %82 : vector<1x16xf32> to vector<32x16xf32>
    %84 = arith.addf %81, %83 : vector<32x16xf32>
    %c0_37 = arith.constant 0 : index
    %c0_38 = arith.constant 0 : index
    %85 = vector.load %arg4[%c0_37, %c0_38] : memref<32x16xf32, #tpu.memory_space<vmem>>, vector<32x16xf32>
    tpu.vector_store %arg4[%c0_37, %c0_38], %84 {strides = array<i32>} : memref<32x16xf32, #tpu.memory_space<vmem>>, vector<32x16xf32>,
    %c160 = arith.constant 160 : index
    %c0_39 = arith.constant 0 : index
    %86 = vector.load %arg2[%c160, %c0_39] : memref<176x64xf32, #tpu.memory_space<vmem>>, vector<16x16xf32>
    %cst_40 = arith.constant dense<0.000000e+00> : vector<32x16xf32>
    %87 = tpu.matmul %73, %86, %cst_40 {dimension_numbers = #tpu.dot_dimension_numbers<[1], [0], [0], [1], [0, 0, 1, 1], [], []>} : vector<32x16xf32>, vector<16x16xf32>, vector<32x16xf32> -> vector<32x16xf32>
    %c5 = arith.constant 5 : index
    %c0_41 = arith.constant 0 : index
    %88 = vector.load %arg3[%c5, %c0_41] : memref<6x64xf32, #tpu.memory_space<vmem>>, vector<1x16xf32>
    %89 = vector.broadcast %88 : vector<1x16xf32> to vector<32x16xf32>
    %90 = arith.addf %87, %89 : vector<32x16xf32>
    %c0_42 = arith.constant 0 : index
    %c0_43 = arith.constant 0 : index
    %91 = vector.load %arg5[%c0_42, %c0_43] : memref<32x16xf32, #tpu.memory_space<vmem>>, vector<32x16xf32>
    tpu.vector_store %arg5[%c0_42, %c0_43], %90 {strides = array<i32>} : memref<32x16xf32, #tpu.memory_space<vmem>>, vector<32x16xf32>,
    return
  }
  func.func @transform_0(%arg0: i32) -> (i32, i32) {
    %c0_i32 = arith.constant 0 : i32
    %c0_i32_0 = arith.constant 0 : i32
    %c0_i32_1 = arith.constant 0 : i32
    return %c0_i32, %c0_i32_0 : i32, i32
  }
  func.func @transform_1(%arg0: i32) -> (i32, i32) {
    %c0_i32 = arith.constant 0 : i32
    %c0_i32_0 = arith.constant 0 : i32
    %c0_i32_1 = arith.constant 0 : i32
    return %c0_i32, %c0_i32_0 : i32, i32
  }
  func.func @transform_2(%arg0: i32) -> (i32, i32) {
    %c0_i32 = arith.constant 0 : i32
    %c0_i32_0 = arith.constant 0 : i32
    %c0_i32_1 = arith.constant 0 : i32
    return %c0_i32, %c0_i32_0 : i32, i32
  }
  func.func @transform_3(%arg0: i32) -> (i32, i32) {
    %c0_i32 = arith.constant 0 : i32
    %c0_i32_0 = arith.constant 0 : i32
    %c0_i32_1 = arith.constant 0 : i32
    return %c0_i32, %c0_i32_0 : i32, i32
  }
  func.func @transform_4(%arg0: i32) -> (i32, i32) {
    %c0_i32 = arith.constant 0 : i32
    %c0_i32_0 = arith.constant 0 : i32
    %c0_i32_1 = arith.constant 0 : i32
    return %c0_i32, %c0_i32_0 : i32, i32
  }
}

</mosaic_0001>

<llo_original>
// kernel: blocks_forward.1
$region0: #{blocks_forward.1}
  #allocation0 [shape = 'u32[]', space=smem, size = 0x4, offset = 0x4, fixed_abs, tag = 'smem constant byte address 0x4 - core index']
  #allocation1 [shape = 'u32[144,128]{1,0:T(1,128)}', space=vmem, size = 0x12000, scoped, tag = 'internal scratch']
  %s0 = inlined_call_operand.vmem [shape: f32[32,16], index: 0, kind: input, shape index: {}]
  %s1 = inlined_call_operand.vmem [shape: f32[176,64], index: 1, kind: input, shape index: {}]
  %s2 = inlined_call_operand.vmem [shape: f32[6,64], index: 2, kind: input, shape index: {}]
  %s3 = inlined_call_operand.vmem [shape: f32[32,16], index: 3, kind: output, shape index: {0}]
  %s4 = inlined_call_operand.vmem [shape: f32[32,16], index: 4, kind: output, shape index: {1}]
  %5 = xla_tuple %s3, %s4
  %s6 = sld [smem:[#allocation0]]
  $region30: #{blocks_forward.1} parent=0
    _
  %s8 = ssub.s32 1, %s6
  %s9 = scalar_select 0, %s8, %s6
  // Predicated region
  $region2: #{blocks_forward.1} parent=0 // pred_check
    _
  $region3: #{blocks_forward.1} parent=0 // pred_check_branch
    %11 = sbr.rel (0) target = $region5
  $region4: #{blocks_forward.1} parent=0 // pred_region
    _
  $region5: #{blocks_forward.1} parent=0 // pred_fallthru
    _
  // Predicated region
  $region6: #{blocks_forward.1} parent=0 // pred_check
    _
  $region7: #{blocks_forward.1} parent=0 // pred_check_branch
    %13 = sbr.rel (0) target = $region9
  $region8: #{blocks_forward.1} parent=0 // pred_region
    _
  $region9: #{blocks_forward.1} parent=0 // pred_fallthru
    _
  // Predicated region
  $region10: #{blocks_forward.1} parent=0 // pred_check
    _
  $region11: #{blocks_forward.1} parent=0 // pred_check_branch
    %15 = sbr.rel (0) target = $region13
  $region12: #{blocks_forward.1} parent=0 // pred_region
    _
  $region13: #{blocks_forward.1} parent=0 // pred_fallthru
    _
  %v16 = vld [vmem:[%s0] sm:$0xff]
  %v17 = vld [vmem:[%s0 + $0x8] sm:$0xff]
  %v18 = vld [vmem:[%s0 + $0x10] sm:$0xff]
  %v19 = vld [vmem:[%s0 + $0x18] sm:$0xff]
  %v20 = vlaneseq
  %v21 = vshrl.u32 %v20, 7
  %v22 = vadd.s32 %v21, 8
  %v23 = vadd.s32 %v21, 16
  %v24 = vadd.s32 %v21, 24
  %vm25 = vcmp.lt.s32.totalorder %v21, 0
  %v26 = vsub.s32 0, %v21
  %v27 = vsel %vm25, %v26, %v21
  %v28 = vshrl.u32 %v27, 4
  %v29 = vand.u32 %v27, 15
  %v30 = vsub.s32 0, %v29
  %v31 = vsel %vm25, %v30, %v29
  %vm32 = vcmp.lt.s32.totalorder %v22, 0
  %v33 = vsub.s32 0, %v22
  %v34 = vsel %vm32, %v33, %v22
  %v35 = vshrl.u32 %v34, 4
  %v36 = vand.u32 %v34, 15
  %v37 = vsub.s32 0, %v36
  %v38 = vsel %vm32, %v37, %v36
  %vm39 = vcmp.lt.s32.totalorder %v23, 0
  %v40 = vsub.s32 0, %v23
  %v41 = vsel %vm39, %v40, %v23
  %v42 = vshrl.u32 %v41, 4
  %v43 = vand.u32 %v41, 15
  %v44 = vsub.s32 0, %v43
  %v45 = vsel %vm39, %v44, %v43
  %vm46 = vcmp.lt.s32.totalorder %v24, 0
  %v47 = vsub.s32 0, %v24
  %v48 = vsel %vm46, %v47, %v24
  %v49 = vshrl.u32 %v48, 4
  %v50 = vand.u32 %v48, 15
  %v51 = vsub.s32 0, %v50
  %v52 = vsel %vm46, %v51, %v50
  %vm53 = vcmp.ne.s32.totalorder %v31, 0
  %vm54 = vcmp.ne.s32.totalorder %v38, 0
  %vm55 = vcmp.ne.s32.totalorder %v45, 0
  %vm56 = vcmp.ne.s32.totalorder %v52, 0
  %vm57 = vcmp.lt.s32.totalorder %v31, 0
  %vm58 = vcmp.lt.s32.totalorder %v38, 0
  %vm59 = vcmp.lt.s32.totalorder %v45, 0
  %vm60 = vcmp.lt.s32.totalorder %v52, 0
  %vm61 = vmand %vm57, %vm53
  %vm62 = vmand %vm58, %vm54
  %vm63 = vmand %vm59, %vm55
  %vm64 = vmand %vm60, %vm56
  %v65 = vadd.s32 %v31, 16
  %v66 = vadd.s32 %v38, 16
  %v67 = vadd.s32 %v45, 16
  %v68 = vadd.s32 %v52, 16
  %v69 = vsel %vm61, %v65, %v31
  %v70 = vsel %vm62, %v66, %v38
  %v71 = vsel %vm63, %v67, %v45
  %v72 = vsel %vm64, %v68, %v52
  %vm73 = vcmp.lt.s32.totalorder %v69, 1
  %vm74 = vcmp.lt.s32.totalorder %v70, 1
  %vm75 = vcmp.lt.s32.totalorder %v71, 1
  %vm76 = vcmp.lt.s32.totalorder %v72, 1
  %v77 = vld [vmem:[%s2] sm:$0x1]
  %v78 = vrot.slane %v16, 7
  %v79 = vrot.slane %v17, 7
  %v80 = vrot.slane %v18, 7
  %v81 = vrot.slane %v19, 7
  %vm82 = vcmp.lt.s32.totalorder %v21, 1
  %v83 = vsel %vm82, %v80, %v81
  %v84 = vsel %vm82, %v79, %v80
  %v85 = vsel %vm82, %v78, %v79
  %v86 = vsel %vm82, %v81, %v78
  %v87 = vsel %vm73, 0.0, %v86
  %v88 = vsel %vm74, 0.0, %v85
  %v89 = vsel %vm75, 0.0, %v84
  %v90 = vsel %vm76, 0.0, %v83
  %v91 = vld [vmem:[%s1] sm:$0xff]
  %v92 = vld [vmem:[%s1 + $0x8] sm:$0xff]
  %vm93 = vcmask 130048
  %v95 = vsel %vm93, %v87, 0
  %v98 = vsel %vm93, %v88, 0
  %v101 = vsel %vm93, %v89, 0
  %v104 = vsel %vm93, %v90, 0
  %106 = vmatprep.subr.mxu0 0.0
  %107 = vmatpush1.msra.mxu0 0.0
  %108 = vmatprep.subr.mxu0 0.0
  %109 = vmatpush1.msra.mxu0 0.0
  %110 = vmatprep.subr.mxu0 0.0
  %111 = vmatpush1.msra.mxu0 0.0
  %112 = vmatprep.subr.mxu0 0.0
  %113 = vmatpush1.msra.mxu0 0.0
  %114 = vmatprep.subr.mxu0 0.0
  %115 = vmatpush1.msra.mxu0 0.0
  %116 = vmatprep.subr.mxu0 0.0
  %117 = vmatpush1.msra.mxu0 0.0
  %118 = vmatprep.subr.mxu0 0.0
  %119 = vmatpush1.msra.mxu0 0.0
  %120 = vmatprep.subr.mxu0 0.0
  %121 = vmatpush1.msra.mxu0 0.0
  %122 = vmatprep.subr.mxu0 0.0
  %123 = vmatpush1.msra.mxu0 0.0
  %124 = vmatprep.subr.mxu0 0.0
  %125 = vmatpush1.msra.mxu0 0.0
  %126 = vmatprep.subr.mxu0 0.0
  %127 = vmatpush1.msra.mxu0 0.0
  %128 = vmatprep.subr.mxu0 0.0
  %129 = vmatpush1.msra.mxu0 0.0
  %130 = vmatprep.subr.mxu0 0.0
  %131 = vmatpush1.msra.mxu0 0.0
  %132 = vmatprep.subr.mxu0 0.0
  %133 = vmatpush1.msra.mxu0 0.0
  %134 = vmatprep.subr.mxu0 0.0
  %135 = vmatpush1.msra.mxu0 %v92
  %136 = vmatprep.subr.mxu0 0.0
  %137 = vmatpush1.msra.mxu0 %v91
  %138 = vmatprep.subr.mxu0 0.0
  %139 = vmatpush2.msra.mxu0 0.0
  %140 = vmatprep.subr.mxu0 0.0
  %141 = vmatpush2.msra.mxu0 0.0
  %142 = vmatprep.subr.mxu0 0.0
  %143 = vmatpush2.msra.mxu0 0.0
  %144 = vmatprep.subr.mxu0 0.0
  %145 = vmatpush2.msra.mxu0 0.0
  %146 = vmatprep.subr.mxu0 0.0
  %147 = vmatpush2.msra.mxu0 0.0
  %148 = vmatprep.subr.mxu0 0.0
  %149 = vmatpush2.msra.mxu0 0.0
  %150 = vmatprep.subr.mxu0 0.0
  %151 = vmatpush2.msra.mxu0 0.0
  %152 = vmatprep.subr.mxu0 0.0
  %153 = vmatpush2.msra.mxu0 0.0
  %154 = vmatprep.subr.mxu0 0.0
  %155 = vmatpush2.msra.mxu0 0.0
  %156 = vmatprep.subr.mxu0 0.0
  %157 = vmatpush2.msra.mxu0 0.0
  %158 = vmatprep.subr.mxu0 0.0
  %159 = vmatpush2.msra.mxu0 0.0
  %160 = vmatprep.subr.mxu0 0.0
  %161 = vmatpush2.msra.mxu0 0.0
  %162 = vmatprep.subr.mxu0 0.0
  %163 = vmatpush2.msra.mxu0 0.0
  %164 = vmatprep.subr.mxu0 0.0
  %165 = vmatpush2.msra.mxu0 0.0
  %166 = vmatprep.subr.mxu0 0.0
  %167 = vmatpush2.msra.mxu0 0.0
  %168 = vmatprep.subr.mxu0 0.0
  %169 = vmatpush2.msra.mxu0 0.0
  %170 = vmatprep.mubr.f32.mxu0 0.0
  %171 = vmatmul.mubr.f32.gmra.mxu0 %v95
  %v172 = vpop.f32.mrf.mxu0
  %v173 = vadd.f32 0.0, %v172
  %v174 = vpop.f32.mrf.mxu0
  %175 = vmatprep.mubr.f32.mxu0 0.0
  %176 = vmatmul.mubr.f32.gmra.mxu0 %v98
  %v177 = vpop.f32.mrf.mxu0
  %v178 = vadd.f32 0.0, %v177
  %v179 = vpop.f32.mrf.mxu0
  %180 = vmatprep.mubr.f32.mxu0 0.0
  %181 = vmatmul.mubr.f32.gmra.mxu0 %v101
  %v182 = vpop.f32.mrf.mxu0
  %v183 = vadd.f32 0.0, %v182
  %v184 = vpop.f32.mrf.mxu0
  %185 = vmatprep.mubr.f32.mxu0 0.0
  %186 = vmatmul.mubr.f32.gmra.mxu0 %v104
  %v187 = vpop.f32.mrf.mxu0
  %v188 = vadd.f32 0.0, %v187
  %v189 = vpop.f32.mrf.mxu0
  %190 = vdwg.mxu0
  %v191 = vlaneseq
  %v192 = vshrl.u32 %v191, 7
  %v193 = vsub.s32 0, %v192
  %v194 = vrot.slane %v77, %v193
  %v195 = vadd.f32 %v194, %v173
  %v196 = vadd.f32 %v194, %v178
  %v197 = vadd.f32 %v194, %v183
  %v198 = vadd.f32 %v194, %v188
  %v199 = vld [vmem:[%s1 + $0x10] sm:$0xff]
  %v200 = vld [vmem:[%s1 + $0x18] sm:$0xff]
  %v202 = vsel %vm93, %v16, 0
  %v205 = vsel %vm93, %v17, 0
  %v208 = vsel %vm93, %v18, 0
  %v211 = vsel %vm93, %v19, 0
  %213 = vmatprep.subr.mxu0 0.0
  %214 = vmatpush1.msra.mxu0 0.0
  %215 = vmatprep.subr.mxu0 0.0
  %216 = vmatpush1.msra.mxu0 0.0
  %217 = vmatprep.subr.mxu0 0.0
  %218 = vmatpush1.msra.mxu0 0.0
  %219 = vmatprep.subr.mxu0 0.0
  %220 = vmatpush1.msra.mxu0 0.0
  %221 = vmatprep.subr.mxu0 0.0
  %222 = vmatpush1.msra.mxu0 0.0
  %223 = vmatprep.subr.mxu0 0.0
  %224 = vmatpush1.msra.mxu0 0.0
  %225 = vmatprep.subr.mxu0 0.0
  %226 = vmatpush1.msra.mxu0 0.0
  %227 = vmatprep.subr.mxu0 0.0
  %228 = vmatpush1.msra.mxu0 0.0
  %229 = vmatprep.subr.mxu0 0.0
  %230 = vmatpush1.msra.mxu0 0.0
  %231 = vmatprep.subr.mxu0 0.0
  %232 = vmatpush1.msra.mxu0 0.0
  %233 = vmatprep.subr.mxu0 0.0
  %234 = vmatpush1.msra.mxu0 0.0
  %235 = vmatprep.subr.mxu0 0.0
  %236 = vmatpush1.msra.mxu0 0.0
  %237 = vmatprep.subr.mxu0 0.0
  %238 = vmatpush1.msra.mxu0 0.0
  %239 = vmatprep.subr.mxu0 0.0
  %240 = vmatpush1.msra.mxu0 0.0
  %241 = vmatprep.subr.mxu0 0.0
  %242 = vmatpush1.msra.mxu0 %v200
  %243 = vmatprep.subr.mxu0 0.0
  %244 = vmatpush1.msra.mxu0 %v199
  %245 = vmatprep.subr.mxu0 0.0
  %246 = vmatpush2.msra.mxu0 0.0
  %247 = vmatprep.subr.mxu0 0.0
  %248 = vmatpush2.msra.mxu0 0.0
  %249 = vmatprep.subr.mxu0 0.0
  %250 = vmatpush2.msra.mxu0 0.0
  %251 = vmatprep.subr.mxu0 0.0
  %252 = vmatpush2.msra.mxu0 0.0
  %253 = vmatprep.subr.mxu0 0.0
  %254 = vmatpush2.msra.mxu0 0.0
  %255 = vmatprep.subr.mxu0 0.0
  %256 = vmatpush2.msra.mxu0 0.0
  %257 = vmatprep.subr.mxu0 0.0
  %258 = vmatpush2.msra.mxu0 0.0
  %259 = vmatprep.subr.mxu0 0.0
  %260 = vmatpush2.msra.mxu0 0.0
  %261 = vmatprep.subr.mxu0 0.0
  %262 = vmatpush2.msra.mxu0 0.0
  %263 = vmatprep.subr.mxu0 0.0
  %264 = vmatpush2.msra.mxu0 0.0
  %265 = vmatprep.subr.mxu0 0.0
  %266 = vmatpush2.msra.mxu0 0.0
  %267 = vmatprep.subr.mxu0 0.0
  %268 = vmatpush2.msra.mxu0 0.0
  %269 = vmatprep.subr.mxu0 0.0
  %270 = vmatpush2.msra.mxu0 0.0
  %271 = vmatprep.subr.mxu0 0.0
  %272 = vmatpush2.msra.mxu0 0.0
  %273 = vmatprep.subr.mxu0 0.0
  %274 = vmatpush2.msra.mxu0 0.0
  %275 = vmatprep.subr.mxu0 0.0
  %276 = vmatpush2.msra.mxu0 0.0
  %277 = vmatprep.mubr.f32.mxu0 0.0
  %278 = vmatmul.mubr.f32.gmra.mxu0 %v202
  %v279 = vpop.f32.mrf.mxu0
  %v280 = vadd.f32 0.0, %v279
  %v281 = vpop.f32.mrf.mxu0
  %282 = vmatprep.mubr.f32.mxu0 0.0
  %283 = vmatmul.mubr.f32.gmra.mxu0 %v205
  %v284 = vpop.f32.mrf.mxu0
  %v285 = vadd.f32 0.0, %v284
  %v286 = vpop.f32.mrf.mxu0
  %287 = vmatprep.mubr.f32.mxu0 0.0
  %288 = vmatmul.mubr.f32.gmra.mxu0 %v208
  %v289 = vpop.f32.mrf.mxu0
  %v290 = vadd.f32 0.0, %v289
  %v291 = vpop.f32.mrf.mxu0
  %292 = vmatprep.mubr.f32.mxu0 0.0
  %293 = vmatmul.mubr.f32.gmra.mxu0 %v211
  %v294 = vpop.f32.mrf.mxu0
  %v295 = vadd.f32 0.0, %v294
  %v296 = vpop.f32.mrf.mxu0
  %297 = vdwg.mxu0
  %v298 = vadd.f32 %v195, %v280
  %v299 = vadd.f32 %v196, %v285
  %v300 = vadd.f32 %v197, %v290
  %v301 = vadd.f32 %v198, %v295
  %v302 = vmax.f32 %v298, 0.0
  %v303 = vmax.f32 %v299, 0.0
  %v304 = vmax.f32 %v300, 0.0
  %v305 = vmax.f32 %v301, 0.0
  %v306 = vxor.u32 %v298, 2147483648
  %v307 = vxor.u32 %v299, 2147483648
  %v308 = vxor.u32 %v300, 2147483648
  %v309 = vxor.u32 %v301, 2147483648
  %v310 = vmul.f32 %v306, 1.442695
  %v311 = vpow.pop %v310
  %v312 = vmul.f32 %v307, 1.442695
  %v313 = vpow.pop %v312
  %v314 = vmul.f32 %v308, 1.442695
  %v315 = vpow.pop %v314
  %v316 = vmul.f32 %v309, 1.442695
  %v317 = vpow.pop %v316
  %v318 = vadd.f32 %v311, 1.0
  %v319 = vadd.f32 %v313, 1.0
  %v320 = vadd.f32 %v315, 1.0
  %v321 = vadd.f32 %v317, 1.0
  %v322 = vrcp.pop %v318
  %v323 = vmul.f32 1.0, %v322
  %v324 = vrcp.pop %v319
  %v325 = vmul.f32 1.0, %v324
  %v326 = vrcp.pop %v320
  %v327 = vmul.f32 1.0, %v326
  %v328 = vrcp.pop %v321
  %v329 = vmul.f32 1.0, %v328
  %334 = vrot.lane.b32.xlu0 %v323, 96
  %v335 = vpop.permute.xlu0 %334
  %336 = vrot.lane.b32.xlu0 %v325, 96
  %v337 = vpop.permute.xlu0 %336
  %338 = vrot.lane.b32.xlu0 %v327, 96
  %v339 = vpop.permute.xlu0 %338
  %340 = vrot.lane.b32.xlu0 %v329, 96
  %v341 = vpop.permute.xlu0 %340
  %v346 = vmul.f32 %v302, %v335
  %v347 = vmul.f32 %v303, %v337
  %v348 = vmul.f32 %v304, %v339
  %v349 = vmul.f32 %v305, %v341
  %v350 = vld [vmem:[%s1 + $0x40] sm:$0xff]
  %v351 = vld [vmem:[%s1 + $0x48] sm:$0xff]
  %v352 = vld [vmem:[%s1 + $0x50] sm:$0xff]
  %v353 = vld [vmem:[%s1 + $0x58] sm:$0xff]
  %vm354 = vcmask 261120
  %v356 = vsel %vm354, %v346, 0
  %v359 = vsel %vm354, %v347, 0
  %v362 = vsel %vm354, %v348, 0
  %v365 = vsel %vm354, %v349, 0
  %367 = vmatprep.subr.mxu0 0.0
  %368 = vmatpush1.msra.mxu0 0.0
  %369 = vmatprep.subr.mxu0 0.0
  %370 = vmatpush1.msra.mxu0 0.0
  %371 = vmatprep.subr.mxu0 0.0
  %372 = vmatpush1.msra.mxu0 0.0
  %373 = vmatprep.subr.mxu0 0.0
  %374 = vmatpush1.msra.mxu0 0.0
  %375 = vmatprep.subr.mxu0 0.0
  %376 = vmatpush1.msra.mxu0 0.0
  %377 = vmatprep.subr.mxu0 0.0
  %378 = vmatpush1.msra.mxu0 0.0
  %379 = vmatprep.subr.mxu0 0.0
  %380 = vmatpush1.msra.mxu0 0.0
  %381 = vmatprep.subr.mxu0 0.0
  %382 = vmatpush1.msra.mxu0 0.0
  %383 = vmatprep.subr.mxu0 0.0
  %384 = vmatpush1.msra.mxu0 0.0
  %385 = vmatprep.subr.mxu0 0.0
  %386 = vmatpush1.msra.mxu0 0.0
  %387 = vmatprep.subr.mxu0 0.0
  %388 = vmatpush1.msra.mxu0 0.0
  %389 = vmatprep.subr.mxu0 0.0
  %390 = vmatpush1.msra.mxu0 0.0
  %391 = vmatprep.subr.mxu0 0.0
  %392 = vmatpush1.msra.mxu0 %v353
  %393 = vmatprep.subr.mxu0 0.0
  %394 = vmatpush1.msra.mxu0 %v352
  %395 = vmatprep.subr.mxu0 0.0
  %396 = vmatpush1.msra.mxu0 %v351
  %397 = vmatprep.subr.mxu0 0.0
  %398 = vmatpush1.msra.mxu0 %v350
  %399 = vmatprep.subr.mxu0 0.0
  %400 = vmatpush2.msra.mxu0 0.0
  %401 = vmatprep.subr.mxu0 0.0
  %402 = vmatpush2.msra.mxu0 0.0
  %403 = vmatprep.subr.mxu0 0.0
  %404 = vmatpush2.msra.mxu0 0.0
  %405 = vmatprep.subr.mxu0 0.0
  %406 = vmatpush2.msra.mxu0 0.0
  %407 = vmatprep.subr.mxu0 0.0
  %408 = vmatpush2.msra.mxu0 0.0
  %409 = vmatprep.subr.mxu0 0.0
  %410 = vmatpush2.msra.mxu0 0.0
  %411 = vmatprep.subr.mxu0 0.0
  %412 = vmatpush2.msra.mxu0 0.0
  %413 = vmatprep.subr.mxu0 0.0
  %414 = vmatpush2.msra.mxu0 0.0
  %415 = vmatprep.subr.mxu0 0.0
  %416 = vmatpush2.msra.mxu0 0.0
  %417 = vmatprep.subr.mxu0 0.0
  %418 = vmatpush2.msra.mxu0 0.0
  %419 = vmatprep.subr.mxu0 0.0
  %420 = vmatpush2.msra.mxu0 0.0
  %421 = vmatprep.subr.mxu0 0.0
  %422 = vmatpush2.msra.mxu0 0.0
  %423 = vmatprep.subr.mxu0 0.0
  %424 = vmatpush2.msra.mxu0 0.0
  %425 = vmatprep.subr.mxu0 0.0
  %426 = vmatpush2.msra.mxu0 0.0
  %427 = vmatprep.subr.mxu0 0.0
  %428 = vmatpush2.msra.mxu0 0.0
  %429 = vmatprep.subr.mxu0 0.0
  %430 = vmatpush2.msra.mxu0 0.0
  %431 = vmatprep.mubr.f32.mxu0 0.0
  %432 = vmatmul.mubr.f32.gmra.mxu0 %v356
  %v433 = vpop.f32.mrf.mxu0
  %v434 = vadd.f32 0.0, %v433
  %v435 = vpop.f32.mrf.mxu0
  %436 = vmatprep.mubr.f32.mxu0 0.0
  %437 = vmatmul.mubr.f32.gmra.mxu0 %v359
  %v438 = vpop.f32.mrf.mxu0
  %v439 = vadd.f32 0.0, %v438
  %v440 = vpop.f32.mrf.mxu0
  %441 = vmatprep.mubr.f32.mxu0 0.0
  %442 = vmatmul.mubr.f32.gmra.mxu0 %v362
  %v443 = vpop.f32.mrf.mxu0
  %v444 = vadd.f32 0.0, %v443
  %v445 = vpop.f32.mrf.mxu0
  %446 = vmatprep.mubr.f32.mxu0 0.0
  %447 = vmatmul.mubr.f32.gmra.mxu0 %v365
  %v448 = vpop.f32.mrf.mxu0
  %v449 = vadd.f32 0.0, %v448
  %v450 = vpop.f32.mrf.mxu0
  %451 = vdwg.mxu0
  %v452 = vadd.f32 %v16, %v434
  %v453 = vadd.f32 %v17, %v439
  %v454 = vadd.f32 %v18, %v444
  %v455 = vadd.f32 %v19, %v449
  %v456 = vld [vmem:[%s2 + $0x2] sm:$0x1]
  %v457 = vlaneseq
  %v458 = vshrl.u32 %v457, 7
  %v459 = vsub.s32 0, %v458
  %v460 = vrot.slane %v456, %v459
  %v461 = vadd.f32 %v452, %v460
  %v462 = vadd.f32 %v453, %v460
  %v463 = vadd.f32 %v454, %v460
  %v464 = vadd.f32 %v455, %v460
  %v465 = vld [vmem:[%s2 + $0x1] sm:$0x1]
  %v466 = vrot.slane %v461, 7
  %v467 = vrot.slane %v462, 7
  %v468 = vrot.slane %v463, 7
  %v469 = vrot.slane %v464, 7
  %v470 = vsel %vm82, %v468, %v469
  %v471 = vsel %vm82, %v467, %v468
  %v472 = vsel %vm82, %v466, %v467
  %v473 = vsel %vm82, %v469, %v466
  %v474 = vsel %vm73, 0.0, %v473
  %v475 = vsel %vm74, 0.0, %v472
  %v476 = vsel %vm75, 0.0, %v471
  %v477 = vsel %vm76, 0.0, %v470
  %v478 = vld [vmem:[%s1 + $0x20] sm:$0xff]
  %v479 = vld [vmem:[%s1 + $0x28] sm:$0xff]
  %v481 = vsel %vm93, %v474, 0
  %v484 = vsel %vm93, %v475, 0
  %v487 = vsel %vm93, %v476, 0
  %v490 = vsel %vm93, %v477, 0
  %492 = vmatprep.subr.mxu0 0.0
  %493 = vmatpush1.msra.mxu0 0.0
  %494 = vmatprep.subr.mxu0 0.0
  %495 = vmatpush1.msra.mxu0 0.0
  %496 = vmatprep.subr.mxu0 0.0
  %497 = vmatpush1.msra.mxu0 0.0
  %498 = vmatprep.subr.mxu0 0.0
  %499 = vmatpush1.msra.mxu0 0.0
  %500 = vmatprep.subr.mxu0 0.0
  %501 = vmatpush1.msra.mxu0 0.0
  %502 = vmatprep.subr.mxu0 0.0
  %503 = vmatpush1.msra.mxu0 0.0
  %504 = vmatprep.subr.mxu0 0.0
  %505 = vmatpush1.msra.mxu0 0.0
  %506 = vmatprep.subr.mxu0 0.0
  %507 = vmatpush1.msra.mxu0 0.0
  %508 = vmatprep.subr.mxu0 0.0
  %509 = vmatpush1.msra.mxu0 0.0
  %510 = vmatprep.subr.mxu0 0.0
  %511 = vmatpush1.msra.mxu0 0.0
  %512 = vmatprep.subr.mxu0 0.0
  %513 = vmatpush1.msra.mxu0 0.0
  %514 = vmatprep.subr.mxu0 0.0
  %515 = vmatpush1.msra.mxu0 0.0
  %516 = vmatprep.subr.mxu0 0.0
  %517 = vmatpush1.msra.mxu0 0.0
  %518 = vmatprep.subr.mxu0 0.0
  %519 = vmatpush1.msra.mxu0 0.0
  %520 = vmatprep.subr.mxu0 0.0
  %521 = vmatpush1.msra.mxu0 %v479
  %522 = vmatprep.subr.mxu0 0.0
  %523 = vmatpush1.msra.mxu0 %v478
  %524 = vmatprep.subr.mxu0 0.0
  %525 = vmatpush2.msra.mxu0 0.0
  %526 = vmatprep.subr.mxu0 0.0
  %527 = vmatpush2.msra.mxu0 0.0
  %528 = vmatprep.subr.mxu0 0.0
  %529 = vmatpush2.msra.mxu0 0.0
  %530 = vmatprep.subr.mxu0 0.0
  %531 = vmatpush2.msra.mxu0 0.0
  %532 = vmatprep.subr.mxu0 0.0
  %533 = vmatpush2.msra.mxu0 0.0
  %534 = vmatprep.subr.mxu0 0.0
  %535 = vmatpush2.msra.mxu0 0.0
  %536 = vmatprep.subr.mxu0 0.0
  %537 = vmatpush2.msra.mxu0 0.0
  %538 = vmatprep.subr.mxu0 0.0
  %539 = vmatpush2.msra.mxu0 0.0
  %540 = vmatprep.subr.mxu0 0.0
  %541 = vmatpush2.msra.mxu0 0.0
  %542 = vmatprep.subr.mxu0 0.0
  %543 = vmatpush2.msra.mxu0 0.0
  %544 = vmatprep.subr.mxu0 0.0
  %545 = vmatpush2.msra.mxu0 0.0
  %546 = vmatprep.subr.mxu0 0.0
  %547 = vmatpush2.msra.mxu0 0.0
  %548 = vmatprep.subr.mxu0 0.0
  %549 = vmatpush2.msra.mxu0 0.0
  %550 = vmatprep.subr.mxu0 0.0
  %551 = vmatpush2.msra.mxu0 0.0
  %552 = vmatprep.subr.mxu0 0.0
  %553 = vmatpush2.msra.mxu0 0.0
  %554 = vmatprep.subr.mxu0 0.0
  %555 = vmatpush2.msra.mxu0 0.0
  %556 = vmatprep.mubr.f32.mxu0 0.0
  %557 = vmatmul.mubr.f32.gmra.mxu0 %v481
  %v558 = vpop.f32.mrf.mxu0
  %v559 = vadd.f32 0.0, %v558
  %v560 = vpop.f32.mrf.mxu0
  %561 = vmatprep.mubr.f32.mxu0 0.0
  %562 = vmatmul.mubr.f32.gmra.mxu0 %v484
  %v563 = vpop.f32.mrf.mxu0
  %v564 = vadd.f32 0.0, %v563
  %v565 = vpop.f32.mrf.mxu0
  %566 = vmatprep.mubr.f32.mxu0 0.0
  %567 = vmatmul.mubr.f32.gmra.mxu0 %v487
  %v568 = vpop.f32.mrf.mxu0
  %v569 = vadd.f32 0.0, %v568
  %v570 = vpop.f32.mrf.mxu0
  %571 = vmatprep.mubr.f32.mxu0 0.0
  %572 = vmatmul.mubr.f32.gmra.mxu0 %v490
  %v573 = vpop.f32.mrf.mxu0
  %v574 = vadd.f32 0.0, %v573
  %v575 = vpop.f32.mrf.mxu0
  %576 = vdwg.mxu0
  %v577 = vlaneseq
  %v578 = vshrl.u32 %v577, 7
  %v579 = vsub.s32 0, %v578
  %v580 = vrot.slane %v465, %v579
  %v581 = vadd.f32 %v580, %v559
  %v582 = vadd.f32 %v580, %v564
  %v583 = vadd.f32 %v580, %v569
  %v584 = vadd.f32 %v580, %v574
  %v585 = vld [vmem:[%s1 + $0x30] sm:$0xff]
  %v586 = vld [vmem:[%s1 + $0x38] sm:$0xff]
  %v588 = vsel %vm93, %v461, 0
  %v591 = vsel %vm93, %v462, 0
  %v594 = vsel %vm93, %v463, 0
  %v597 = vsel %vm93, %v464, 0
  %599 = vmatprep.subr.mxu0 0.0
  %600 = vmatpush1.msra.mxu0 0.0
  %601 = vmatprep.subr.mxu0 0.0
  %602 = vmatpush1.msra.mxu0 0.0
  %603 = vmatprep.subr.mxu0 0.0
  %604 = vmatpush1.msra.mxu0 0.0
  %605 = vmatprep.subr.mxu0 0.0
  %606 = vmatpush1.msra.mxu0 0.0
  %607 = vmatprep.subr.mxu0 0.0
  %608 = vmatpush1.msra.mxu0 0.0
  %609 = vmatprep.subr.mxu0 0.0
  %610 = vmatpush1.msra.mxu0 0.0
  %611 = vmatprep.subr.mxu0 0.0
  %612 = vmatpush1.msra.mxu0 0.0
  %613 = vmatprep.subr.mxu0 0.0
  %614 = vmatpush1.msra.mxu0 0.0
  %615 = vmatprep.subr.mxu0 0.0
  %616 = vmatpush1.msra.mxu0 0.0
  %617 = vmatprep.subr.mxu0 0.0
  %618 = vmatpush1.msra.mxu0 0.0
  %619 = vmatprep.subr.mxu0 0.0
  %620 = vmatpush1.msra.mxu0 0.0
  %621 = vmatprep.subr.mxu0 0.0
  %622 = vmatpush1.msra.mxu0 0.0
  %623 = vmatprep.subr.mxu0 0.0
  %624 = vmatpush1.msra.mxu0 0.0
  %625 = vmatprep.subr.mxu0 0.0
  %626 = vmatpush1.msra.mxu0 0.0
  %627 = vmatprep.subr.mxu0 0.0
  %628 = vmatpush1.msra.mxu0 %v586
  %629 = vmatprep.subr.mxu0 0.0
  %630 = vmatpush1.msra.mxu0 %v585
  %631 = vmatprep.subr.mxu0 0.0
  %632 = vmatpush2.msra.mxu0 0.0
  %633 = vmatprep.subr.mxu0 0.0
  %634 = vmatpush2.msra.mxu0 0.0
  %635 = vmatprep.subr.mxu0 0.0
  %636 = vmatpush2.msra.mxu0 0.0
  %637 = vmatprep.subr.mxu0 0.0
  %638 = vmatpush2.msra.mxu0 0.0
  %639 = vmatprep.subr.mxu0 0.0
  %640 = vmatpush2.msra.mxu0 0.0
  %641 = vmatprep.subr.mxu0 0.0
  %642 = vmatpush2.msra.mxu0 0.0
  %643 = vmatprep.subr.mxu0 0.0
  %644 = vmatpush2.msra.mxu0 0.0
  %645 = vmatprep.subr.mxu0 0.0
  %646 = vmatpush2.msra.mxu0 0.0
  %647 = vmatprep.subr.mxu0 0.0
  %648 = vmatpush2.msra.mxu0 0.0
  %649 = vmatprep.subr.mxu0 0.0
  %650 = vmatpush2.msra.mxu0 0.0
  %651 = vmatprep.subr.mxu0 0.0
  %652 = vmatpush2.msra.mxu0 0.0
  %653 = vmatprep.subr.mxu0 0.0
  %654 = vmatpush2.msra.mxu0 0.0
  %655 = vmatprep.subr.mxu0 0.0
  %656 = vmatpush2.msra.mxu0 0.0
  %657 = vmatprep.subr.mxu0 0.0
  %658 = vmatpush2.msra.mxu0 0.0
  %659 = vmatprep.subr.mxu0 0.0
  %660 = vmatpush2.msra.mxu0 0.0
  %661 = vmatprep.subr.mxu0 0.0
  %662 = vmatpush2.msra.mxu0 0.0
  %663 = vmatprep.mubr.f32.mxu0 0.0
  %664 = vmatmul.mubr.f32.gmra.mxu0 %v588
  %v665 = vpop.f32.mrf.mxu0
  %v666 = vadd.f32 0.0, %v665
  %v667 = vpop.f32.mrf.mxu0
  %668 = vmatprep.mubr.f32.mxu0 0.0
  %669 = vmatmul.mubr.f32.gmra.mxu0 %v591
  %v670 = vpop.f32.mrf.mxu0
  %v671 = vadd.f32 0.0, %v670
  %v672 = vpop.f32.mrf.mxu0
  %673 = vmatprep.mubr.f32.mxu0 0.0
  %674 = vmatmul.mubr.f32.gmra.mxu0 %v594
  %v675 = vpop.f32.mrf.mxu0
  %v676 = vadd.f32 0.0, %v675
  %v677 = vpop.f32.mrf.mxu0
  %678 = vmatprep.mubr.f32.mxu0 0.0
  %679 = vmatmul.mubr.f32.gmra.mxu0 %v597
  %v680 = vpop.f32.mrf.mxu0
  %v681 = vadd.f32 0.0, %v680
  %v682 = vpop.f32.mrf.mxu0
  %683 = vdwg.mxu0
  %v684 = vadd.f32 %v581, %v666
  %v685 = vadd.f32 %v582, %v671
  %v686 = vadd.f32 %v583, %v676
  %v687 = vadd.f32 %v584, %v681
  %v688 = vmax.f32 %v684, 0.0
  %v689 = vmax.f32 %v685, 0.0
  %v690 = vmax.f32 %v686, 0.0
  %v691 = vmax.f32 %v687, 0.0
  %v692 = vxor.u32 %v684, 2147483648
  %v693 = vxor.u32 %v685, 2147483648
  %v694 = vxor.u32 %v686, 2147483648
  %v695 = vxor.u32 %v687, 2147483648
  %v696 = vmul.f32 %v692, 1.442695
  %v697 = vpow.pop %v696
  %v698 = vmul.f32 %v693, 1.442695
  %v699 = vpow.pop %v698
  %v700 = vmul.f32 %v694, 1.442695
  %v701 = vpow.pop %v700
  %v702 = vmul.f32 %v695, 1.442695
  %v703 = vpow.pop %v702
  %v704 = vadd.f32 %v697, 1.0
  %v705 = vadd.f32 %v699, 1.0
  %v706 = vadd.f32 %v701, 1.0
  %v707 = vadd.f32 %v703, 1.0
  %v708 = vrcp.pop %v704
  %v709 = vmul.f32 1.0, %v708
  %v710 = vrcp.pop %v705
  %v711 = vmul.f32 1.0, %v710
  %v712 = vrcp.pop %v706
  %v713 = vmul.f32 1.0, %v712
  %v714 = vrcp.pop %v707
  %v715 = vmul.f32 1.0, %v714
  %720 = vrot.lane.b32.xlu0 %v709, 96
  %v721 = vpop.permute.xlu0 %720
  %722 = vrot.lane.b32.xlu0 %v711, 96
  %v723 = vpop.permute.xlu0 %722
  %724 = vrot.lane.b32.xlu0 %v713, 96
  %v725 = vpop.permute.xlu0 %724
  %726 = vrot.lane.b32.xlu0 %v715, 96
  %v727 = vpop.permute.xlu0 %726
  %v732 = vmul.f32 %v688, %v721
  %v733 = vmul.f32 %v689, %v723
  %v734 = vmul.f32 %v690, %v725
  %v735 = vmul.f32 %v691, %v727
  %v736 = vld [vmem:[%s1 + $0x60] sm:$0xff]
  %v737 = vld [vmem:[%s1 + $0x68] sm:$0xff]
  %v738 = vld [vmem:[%s1 + $0x70] sm:$0xff]
  %v739 = vld [vmem:[%s1 + $0x78] sm:$0xff]
  %v741 = vsel %vm354, %v732, 0
  %v744 = vsel %vm354, %v733, 0
  %v747 = vsel %vm354, %v734, 0
  %v750 = vsel %vm354, %v735, 0
  %752 = vmatprep.subr.mxu0 0.0
  %753 = vmatpush1.msra.mxu0 0.0
  %754 = vmatprep.subr.mxu0 0.0
  %755 = vmatpush1.msra.mxu0 0.0
  %756 = vmatprep.subr.mxu0 0.0
  %757 = vmatpush1.msra.mxu0 0.0
  %758 = vmatprep.subr.mxu0 0.0
  %759 = vmatpush1.msra.mxu0 0.0
  %760 = vmatprep.subr.mxu0 0.0
  %761 = vmatpush1.msra.mxu0 0.0
  %762 = vmatprep.subr.mxu0 0.0
  %763 = vmatpush1.msra.mxu0 0.0
  %764 = vmatprep.subr.mxu0 0.0
  %765 = vmatpush1.msra.mxu0 0.0
  %766 = vmatprep.subr.mxu0 0.0
  %767 = vmatpush1.msra.mxu0 0.0
  %768 = vmatprep.subr.mxu0 0.0
  %769 = vmatpush1.msra.mxu0 0.0
  %770 = vmatprep.subr.mxu0 0.0
  %771 = vmatpush1.msra.mxu0 0.0
  %772 = vmatprep.subr.mxu0 0.0
  %773 = vmatpush1.msra.mxu0 0.0
  %774 = vmatprep.subr.mxu0 0.0
  %775 = vmatpush1.msra.mxu0 0.0
  %776 = vmatprep.subr.mxu0 0.0
  %777 = vmatpush1.msra.mxu0 %v739
  %778 = vmatprep.subr.mxu0 0.0
  %779 = vmatpush1.msra.mxu0 %v738
  %780 = vmatprep.subr.mxu0 0.0
  %781 = vmatpush1.msra.mxu0 %v737
  %782 = vmatprep.subr.mxu0 0.0
  %783 = vmatpush1.msra.mxu0 %v736
  %784 = vmatprep.subr.mxu0 0.0
  %785 = vmatpush2.msra.mxu0 0.0
  %786 = vmatprep.subr.mxu0 0.0
  %787 = vmatpush2.msra.mxu0 0.0
  %788 = vmatprep.subr.mxu0 0.0
  %789 = vmatpush2.msra.mxu0 0.0
  %790 = vmatprep.subr.mxu0 0.0
  %791 = vmatpush2.msra.mxu0 0.0
  %792 = vmatprep.subr.mxu0 0.0
  %793 = vmatpush2.msra.mxu0 0.0
  %794 = vmatprep.subr.mxu0 0.0
  %795 = vmatpush2.msra.mxu0 0.0
  %796 = vmatprep.subr.mxu0 0.0
  %797 = vmatpush2.msra.mxu0 0.0
  %798 = vmatprep.subr.mxu0 0.0
  %799 = vmatpush2.msra.mxu0 0.0
  %800 = vmatprep.subr.mxu0 0.0
  %801 = vmatpush2.msra.mxu0 0.0
  %802 = vmatprep.subr.mxu0 0.0
  %803 = vmatpush2.msra.mxu0 0.0
  %804 = vmatprep.subr.mxu0 0.0
  %805 = vmatpush2.msra.mxu0 0.0
  %806 = vmatprep.subr.mxu0 0.0
  %807 = vmatpush2.msra.mxu0 0.0
  %808 = vmatprep.subr.mxu0 0.0
  %809 = vmatpush2.msra.mxu0 0.0
  %810 = vmatprep.subr.mxu0 0.0
  %811 = vmatpush2.msra.mxu0 0.0
  %812 = vmatprep.subr.mxu0 0.0
  %813 = vmatpush2.msra.mxu0 0.0
  %814 = vmatprep.subr.mxu0 0.0
  %815 = vmatpush2.msra.mxu0 0.0
  %816 = vmatprep.mubr.f32.mxu0 0.0
  %817 = vmatmul.mubr.f32.gmra.mxu0 %v741
  %v818 = vpop.f32.mrf.mxu0
  %v819 = vadd.f32 0.0, %v818
  %v820 = vpop.f32.mrf.mxu0
  %821 = vmatprep.mubr.f32.mxu0 0.0
  %822 = vmatmul.mubr.f32.gmra.mxu0 %v744
  %v823 = vpop.f32.mrf.mxu0
  %v824 = vadd.f32 0.0, %v823
  %v825 = vpop.f32.mrf.mxu0
  %826 = vmatprep.mubr.f32.mxu0 0.0
  %827 = vmatmul.mubr.f32.gmra.mxu0 %v747
  %v828 = vpop.f32.mrf.mxu0
  %v829 = vadd.f32 0.0, %v828
  %v830 = vpop.f32.mrf.mxu0
  %831 = vmatprep.mubr.f32.mxu0 0.0
  %832 = vmatmul.mubr.f32.gmra.mxu0 %v750
  %v833 = vpop.f32.mrf.mxu0
  %v834 = vadd.f32 0.0, %v833
  %v835 = vpop.f32.mrf.mxu0
  %836 = vdwg.mxu0
  %v837 = vadd.f32 %v461, %v819
  %v838 = vadd.f32 %v462, %v824
  %v839 = vadd.f32 %v463, %v829
  %v840 = vadd.f32 %v464, %v834
  %v841 = vld [vmem:[%s2 + $0x3] sm:$0x1]
  %v842 = vlaneseq
  %v843 = vshrl.u32 %v842, 7
  %v844 = vsub.s32 0, %v843
  %v845 = vrot.slane %v841, %v844
  %v846 = vadd.f32 %v837, %v845
  %v847 = vadd.f32 %v838, %v845
  %v848 = vadd.f32 %v839, %v845
  %v849 = vadd.f32 %v840, %v845
  %v850 = vrot.slane %v846, 7
  %v851 = vrot.slane %v847, 7
  %v852 = vrot.slane %v848, 7
  %v853 = vrot.slane %v849, 7
  %v854 = vsel %vm82, %v852, %v853
  %v855 = vsel %vm82, %v851, %v852
  %v856 = vsel %vm82, %v850, %v851
  %v857 = vsel %vm82, %v853, %v850
  %v858 = vsel %vm73, 0.0, %v857
  %v859 = vsel %vm74, 0.0, %v856
  %v860 = vsel %vm75, 0.0, %v855
  %v861 = vsel %vm76, 0.0, %v854
  %v862 = vld [vmem:[%s1 + $0x80] sm:$0xff]
  %v863 = vld [vmem:[%s1 + $0x88] sm:$0xff]
  %v864 = vld [vmem:[%s1 + $0x90] sm:$0xff]
  %v865 = vld [vmem:[%s1 + $0x98] sm:$0xff]
  %v867 = vsel %vm93, %v846, 0
  %v870 = vsel %vm93, %v847, 0
  %v873 = vsel %vm93, %v848, 0
  %v876 = vsel %vm93, %v849, 0
  %878 = vmatprep.subr.mxu0 0.0
  %879 = vmatpush1.msra.mxu0 0.0
  %880 = vmatprep.subr.mxu0 0.0
  %881 = vmatpush1.msra.mxu0 0.0
  %882 = vmatprep.subr.mxu0 0.0
  %883 = vmatpush1.msra.mxu0 0.0
  %884 = vmatprep.subr.mxu0 0.0
  %885 = vmatpush1.msra.mxu0 0.0
  %886 = vmatprep.subr.mxu0 0.0
  %887 = vmatpush1.msra.mxu0 0.0
  %888 = vmatprep.subr.mxu0 0.0
  %889 = vmatpush1.msra.mxu0 0.0
  %890 = vmatprep.subr.mxu0 0.0
  %891 = vmatpush1.msra.mxu0 0.0
  %892 = vmatprep.subr.mxu0 0.0
  %893 = vmatpush1.msra.mxu0 0.0
  %894 = vmatprep.subr.mxu0 0.0
  %895 = vmatpush1.msra.mxu0 0.0
  %896 = vmatprep.subr.mxu0 0.0
  %897 = vmatpush1.msra.mxu0 0.0
  %898 = vmatprep.subr.mxu0 0.0
  %899 = vmatpush1.msra.mxu0 0.0
  %900 = vmatprep.subr.mxu0 0.0
  %901 = vmatpush1.msra.mxu0 0.0
  %902 = vmatprep.subr.mxu0 0.0
  %903 = vmatpush1.msra.mxu0 0.0
  %904 = vmatprep.subr.mxu0 0.0
  %905 = vmatpush1.msra.mxu0 0.0
  %906 = vmatprep.subr.mxu0 0.0
  %907 = vmatpush1.msra.mxu0 %v865
  %908 = vmatprep.subr.mxu0 0.0
  %909 = vmatpush1.msra.mxu0 %v864
  %910 = vmatprep.subr.mxu0 0.0
  %911 = vmatpush2.msra.mxu0 0.0
  %912 = vmatprep.subr.mxu0 0.0
  %913 = vmatpush2.msra.mxu0 0.0
  %914 = vmatprep.subr.mxu0 0.0
  %915 = vmatpush2.msra.mxu0 0.0
  %916 = vmatprep.subr.mxu0 0.0
  %917 = vmatpush2.msra.mxu0 0.0
  %918 = vmatprep.subr.mxu0 0.0
  %919 = vmatpush2.msra.mxu0 0.0
  %920 = vmatprep.subr.mxu0 0.0
  %921 = vmatpush2.msra.mxu0 0.0
  %922 = vmatprep.subr.mxu0 0.0
  %923 = vmatpush2.msra.mxu0 0.0
  %924 = vmatprep.subr.mxu0 0.0
  %925 = vmatpush2.msra.mxu0 0.0
  %926 = vmatprep.subr.mxu0 0.0
  %927 = vmatpush2.msra.mxu0 0.0
  %928 = vmatprep.subr.mxu0 0.0
  %929 = vmatpush2.msra.mxu0 0.0
  %930 = vmatprep.subr.mxu0 0.0
  %931 = vmatpush2.msra.mxu0 0.0
  %932 = vmatprep.subr.mxu0 0.0
  %933 = vmatpush2.msra.mxu0 0.0
  %934 = vmatprep.subr.mxu0 0.0
  %935 = vmatpush2.msra.mxu0 0.0
  %936 = vmatprep.subr.mxu0 0.0
  %937 = vmatpush2.msra.mxu0 0.0
  %938 = vmatprep.subr.mxu0 0.0
  %939 = vmatpush2.msra.mxu0 0.0
  %940 = vmatprep.subr.mxu0 0.0
  %941 = vmatpush2.msra.mxu0 0.0
  %942 = vmatprep.mubr.f32.mxu0 0.0
  %943 = vmatmul.mubr.f32.gmra.mxu0 %v867
  %v944 = vpop.f32.mrf.mxu0
  %v945 = vadd.f32 0.0, %v944
  %v946 = vpop.f32.mrf.mxu0
  %947 = vmatprep.mubr.f32.mxu0 0.0
  %948 = vmatmul.mubr.f32.gmra.mxu0 %v870
  %v949 = vpop.f32.mrf.mxu0
  %v950 = vadd.f32 0.0, %v949
  %v951 = vpop.f32.mrf.mxu0
  %952 = vmatprep.mubr.f32.mxu0 0.0
  %953 = vmatmul.mubr.f32.gmra.mxu0 %v873
  %v954 = vpop.f32.mrf.mxu0
  %v955 = vadd.f32 0.0, %v954
  %v956 = vpop.f32.mrf.mxu0
  %957 = vmatprep.mubr.f32.mxu0 0.0
  %958 = vmatmul.mubr.f32.gmra.mxu0 %v876
  %v959 = vpop.f32.mrf.mxu0
  %v960 = vadd.f32 0.0, %v959
  %v961 = vpop.f32.mrf.mxu0
  %962 = vdwg.mxu0
  %v964 = vsel %vm93, %v858, 0
  %v967 = vsel %vm93, %v859, 0
  %v970 = vsel %vm93, %v860, 0
  %v973 = vsel %vm93, %v861, 0
  %975 = vmatprep.subr.mxu0 0.0
  %976 = vmatpush1.msra.mxu0 0.0
  %977 = vmatprep.subr.mxu0 0.0
  %978 = vmatpush1.msra.mxu0 0.0
  %979 = vmatprep.subr.mxu0 0.0
  %980 = vmatpush1.msra.mxu0 0.0
  %981 = vmatprep.subr.mxu0 0.0
  %982 = vmatpush1.msra.mxu0 0.0
  %983 = vmatprep.subr.mxu0 0.0
  %984 = vmatpush1.msra.mxu0 0.0
  %985 = vmatprep.subr.mxu0 0.0
  %986 = vmatpush1.msra.mxu0 0.0
  %987 = vmatprep.subr.mxu0 0.0
  %988 = vmatpush1.msra.mxu0 0.0
  %989 = vmatprep.subr.mxu0 0.0
  %990 = vmatpush1.msra.mxu0 0.0
  %991 = vmatprep.subr.mxu0 0.0
  %992 = vmatpush1.msra.mxu0 0.0
  %993 = vmatprep.subr.mxu0 0.0
  %994 = vmatpush1.msra.mxu0 0.0
  %995 = vmatprep.subr.mxu0 0.0
  %996 = vmatpush1.msra.mxu0 0.0
  %997 = vmatprep.subr.mxu0 0.0
  %998 = vmatpush1.msra.mxu0 0.0
  %999 = vmatprep.subr.mxu0 0.0
  %1000 = vmatpush1.msra.mxu0 0.0
  %1001 = vmatprep.subr.mxu0 0.0
  %1002 = vmatpush1.msra.mxu0 0.0
  %1003 = vmatprep.subr.mxu0 0.0
  %1004 = vmatpush1.msra.mxu0 %v863
  %1005 = vmatprep.subr.mxu0 0.0
  %1006 = vmatpush1.msra.mxu0 %v862
  %1007 = vmatprep.subr.mxu0 0.0
  %1008 = vmatpush2.msra.mxu0 0.0
  %1009 = vmatprep.subr.mxu0 0.0
  %1010 = vmatpush2.msra.mxu0 0.0
  %1011 = vmatprep.subr.mxu0 0.0
  %1012 = vmatpush2.msra.mxu0 0.0
  %1013 = vmatprep.subr.mxu0 0.0
  %1014 = vmatpush2.msra.mxu0 0.0
  %1015 = vmatprep.subr.mxu0 0.0
  %1016 = vmatpush2.msra.mxu0 0.0
  %1017 = vmatprep.subr.mxu0 0.0
  %1018 = vmatpush2.msra.mxu0 0.0
  %1019 = vmatprep.subr.mxu0 0.0
  %1020 = vmatpush2.msra.mxu0 0.0
  %1021 = vmatprep.subr.mxu0 0.0
  %1022 = vmatpush2.msra.mxu0 0.0
  %1023 = vmatprep.subr.mxu0 0.0
  %1024 = vmatpush2.msra.mxu0 0.0
  %1025 = vmatprep.subr.mxu0 0.0
  %1026 = vmatpush2.msra.mxu0 0.0
  %1027 = vmatprep.subr.mxu0 0.0
  %1028 = vmatpush2.msra.mxu0 0.0
  %1029 = vmatprep.subr.mxu0 0.0
  %1030 = vmatpush2.msra.mxu0 0.0
  %1031 = vmatprep.subr.mxu0 0.0
  %1032 = vmatpush2.msra.mxu0 0.0
  %1033 = vmatprep.subr.mxu0 0.0
  %1034 = vmatpush2.msra.mxu0 0.0
  %1035 = vmatprep.subr.mxu0 0.0
  %1036 = vmatpush2.msra.mxu0 0.0
  %1037 = vmatprep.subr.mxu0 0.0
  %1038 = vmatpush2.msra.mxu0 0.0
  %1039 = vmatprep.mubr.f32.mxu0 0.0
  %1040 = vmatmul.mubr.f32.gmra.mxu0 %v964
  %v1041 = vpop.f32.mrf.mxu0
  %v1042 = vadd.f32 %v945, %v1041
  %v1043 = vpop.f32.mrf.mxu0
  %1044 = vmatprep.mubr.f32.mxu0 0.0
  %1045 = vmatmul.mubr.f32.gmra.mxu0 %v967
  %v1046 = vpop.f32.mrf.mxu0
  %v1047 = vadd.f32 %v950, %v1046
  %v1048 = vpop.f32.mrf.mxu0
  %1049 = vmatprep.mubr.f32.mxu0 0.0
  %1050 = vmatmul.mubr.f32.gmra.mxu0 %v970
  %v1051 = vpop.f32.mrf.mxu0
  %v1052 = vadd.f32 %v955, %v1051
  %v1053 = vpop.f32.mrf.mxu0
  %1054 = vmatprep.mubr.f32.mxu0 0.0
  %1055 = vmatmul.mubr.f32.gmra.mxu0 %v973
  %v1056 = vpop.f32.mrf.mxu0
  %v1057 = vadd.f32 %v960, %v1056
  %v1058 = vpop.f32.mrf.mxu0
  %1059 = vdwg.mxu0
  %v1060 = vld [vmem:[%s2 + $0x4] sm:$0x1]
  %v1061 = vlaneseq
  %v1062 = vshrl.u32 %v1061, 7
  %v1063 = vsub.s32 0, %v1062
  %v1064 = vrot.slane %v1060, %v1063
  %v1065 = vadd.f32 %v1042, %v1064
  %v1066 = vadd.f32 %v1047, %v1064
  %v1067 = vadd.f32 %v1052, %v1064
  %v1068 = vadd.f32 %v1057, %v1064
  %1069 = vst.msk [vmem:[%s3] sm:$0xff] %vm93, %v1065
  %1070 = vst.msk [vmem:[%s3 + $0x8] sm:$0xff] %vm93, %v1066
  %1071 = vst.msk [vmem:[%s3 + $0x10] sm:$0xff] %vm93, %v1067
  %1072 = vst.msk [vmem:[%s3 + $0x18] sm:$0xff] %vm93, %v1068
  %v1073 = vld [vmem:[%s1 + $0xa0] sm:$0xff]
  %v1074 = vld [vmem:[%s1 + $0xa8] sm:$0xff]
  %v1075 = vld [vmem:[%s2 + $0x5] sm:$0x1]
  %v1076 = vlaneseq
  %v1077 = vshrl.u32 %v1076, 7
  %v1078 = vsub.s32 0, %v1077
  %v1079 = vrot.slane %v1075, %v1078
  %1080 = vmatprep.subr.mxu0 0.0
  %1081 = vmatpush1.msra.mxu0 0.0
  %1082 = vmatprep.subr.mxu0 0.0
  %1083 = vmatpush1.msra.mxu0 0.0
  %1084 = vmatprep.subr.mxu0 0.0
  %1085 = vmatpush1.msra.mxu0 0.0
  %1086 = vmatprep.subr.mxu0 0.0
  %1087 = vmatpush1.msra.mxu0 0.0
  %1088 = vmatprep.subr.mxu0 0.0
  %1089 = vmatpush1.msra.mxu0 0.0
  %1090 = vmatprep.subr.mxu0 0.0
  %1091 = vmatpush1.msra.mxu0 0.0
  %1092 = vmatprep.subr.mxu0 0.0
  %1093 = vmatpush1.msra.mxu0 0.0
  %1094 = vmatprep.subr.mxu0 0.0
  %1095 = vmatpush1.msra.mxu0 0.0
  %1096 = vmatprep.subr.mxu0 0.0
  %1097 = vmatpush1.msra.mxu0 0.0
  %1098 = vmatprep.subr.mxu0 0.0
  %1099 = vmatpush1.msra.mxu0 0.0
  %1100 = vmatprep.subr.mxu0 0.0
  %1101 = vmatpush1.msra.mxu0 0.0
  %1102 = vmatprep.subr.mxu0 0.0
  %1103 = vmatpush1.msra.mxu0 0.0
  %1104 = vmatprep.subr.mxu0 0.0
  %1105 = vmatpush1.msra.mxu0 0.0
  %1106 = vmatprep.subr.mxu0 0.0
  %1107 = vmatpush1.msra.mxu0 0.0
  %1108 = vmatprep.subr.mxu0 0.0
  %1109 = vmatpush1.msra.mxu0 %v1074
  %1110 = vmatprep.subr.mxu0 0.0
  %1111 = vmatpush1.msra.mxu0 %v1073
  %1112 = vmatprep.subr.mxu0 0.0
  %1113 = vmatpush2.msra.mxu0 0.0
  %1114 = vmatprep.subr.mxu0 0.0
  %1115 = vmatpush2.msra.mxu0 0.0
  %1116 = vmatprep.subr.mxu0 0.0
  %1117 = vmatpush2.msra.mxu0 0.0
  %1118 = vmatprep.subr.mxu0 0.0
  %1119 = vmatpush2.msra.mxu0 0.0
  %1120 = vmatprep.subr.mxu0 0.0
  %1121 = vmatpush2.msra.mxu0 0.0
  %1122 = vmatprep.subr.mxu0 0.0
  %1123 = vmatpush2.msra.mxu0 0.0
  %1124 = vmatprep.subr.mxu0 0.0
  %1125 = vmatpush2.msra.mxu0 0.0
  %1126 = vmatprep.subr.mxu0 0.0
  %1127 = vmatpush2.msra.mxu0 0.0
  %1128 = vmatprep.subr.mxu0 0.0
  %1129 = vmatpush2.msra.mxu0 0.0
  %1130 = vmatprep.subr.mxu0 0.0
  %1131 = vmatpush2.msra.mxu0 0.0
  %1132 = vmatprep.subr.mxu0 0.0
  %1133 = vmatpush2.msra.mxu0 0.0
  %1134 = vmatprep.subr.mxu0 0.0
  %1135 = vmatpush2.msra.mxu0 0.0
  %1136 = vmatprep.subr.mxu0 0.0
  %1137 = vmatpush2.msra.mxu0 0.0
  %1138 = vmatprep.subr.mxu0 0.0
  %1139 = vmatpush2.msra.mxu0 0.0
  %1140 = vmatprep.subr.mxu0 0.0
  %1141 = vmatpush2.msra.mxu0 0.0
  %1142 = vmatprep.subr.mxu0 0.0
  %1143 = vmatpush2.msra.mxu0 0.0
  %1144 = vmatprep.mubr.f32.mxu0 0.0
  %1145 = vmatmul.mubr.f32.gmra.mxu0 %v867
  %v1146 = vpop.f32.mrf.mxu0
  %v1147 = vadd.f32 %v1079, %v1146
  %v1148 = vpop.f32.mrf.mxu0
  %1149 = vmatprep.mubr.f32.mxu0 0.0
  %1150 = vmatmul.mubr.f32.gmra.mxu0 %v870
  %v1151 = vpop.f32.mrf.mxu0
  %v1152 = vadd.f32 %v1079, %v1151
  %v1153 = vpop.f32.mrf.mxu0
  %1154 = vmatprep.mubr.f32.mxu0 0.0
  %1155 = vmatmul.mubr.f32.gmra.mxu0 %v873
  %v1156 = vpop.f32.mrf.mxu0
  %v1157 = vadd.f32 %v1079, %v1156
  %v1158 = vpop.f32.mrf.mxu0
  %1159 = vmatprep.mubr.f32.mxu0 0.0
  %1160 = vmatmul.mubr.f32.gmra.mxu0 %v876
  %v1161 = vpop.f32.mrf.mxu0
  %v1162 = vadd.f32 %v1079, %v1161
  %v1163 = vpop.f32.mrf.mxu0
  %1164 = vdwg.mxu0
  %1165 = vst.msk [vmem:[%s4] sm:$0xff] %vm93, %v1147
  %1166 = vst.msk [vmem:[%s4 + $0x8] sm:$0xff] %vm93, %v1152
  %1167 = vst.msk [vmem:[%s4 + $0x10] sm:$0xff] %vm93, %v1157
  %1168 = vst.msk [vmem:[%s4 + $0x18] sm:$0xff] %vm93, %v1162
  // Predicated region
  $region14: #{blocks_forward.1} parent=0 // pred_check
    _
  $region15: #{blocks_forward.1} parent=0 // pred_check_branch
    %1170 = sbr.rel (0) target = $region17
  $region16: #{blocks_forward.1} parent=0 // pred_region
    _
  $region17: #{blocks_forward.1} parent=0 // pred_fallthru
    _
  // Predicated region
  $region18: #{blocks_forward.1} parent=0 // pred_check
    _
  $region19: #{blocks_forward.1} parent=0 // pred_check_branch
    %1172 = sbr.rel (0) target = $region21
  $region20: #{blocks_forward.1} parent=0 // pred_region
    _
  $region21: #{blocks_forward.1} parent=0 // pred_fallthru
    _
  // Predicated region
  $region22: #{blocks_forward.1} parent=0 // pred_check
    _
  $region23: #{blocks_forward.1} parent=0 // pred_check_branch
    %1174 = sbr.rel (0) target = $region25
  $region24: #{blocks_forward.1} parent=0 // pred_region
    _
  $region25: #{blocks_forward.1} parent=0 // pred_fallthru
    _
  // Predicated region
  $region26: #{blocks_forward.1} parent=0 // pred_check
    _
  $region27: #{blocks_forward.1} parent=0 // pred_check_branch
    %1176 = sbr.rel (0) target = $region29
  $region28: #{blocks_forward.1} parent=0 // pred_region
    _
  $region29: #{blocks_forward.1} parent=0 // pred_fallthru
    _

</llo_original>
